<compile_context>
chip_gen: v5e
topology: v5e:2x2
jax: 0.10.0
libtpu: 0.0.40
codegen_flags: <defaults>
</compile_context>

<pallas_src>
import functools

import jax
import jax.numpy as jnp
from jax.experimental import pallas as pl
from jax.experimental.pallas import tpu as pltpu


# ------------------------------ Pallas kernel -------------------------------

def _upsample_concat_kernel(x_ref, w_ref, b_ref, d_ref, f_ref, o_ref, *,
                            co, cf, gw):
    # x_ref: (1, C, TS)      low-res activation tile (TS = TH*W flat pixels)
    # w_ref: (Co, C)         1x1 conv weight, bf16 (resident)
    # b_ref: (Co, 1)         conv bias, f32 (resident)
    # d_ref: (GW, 4*GW)      0/1 row-group upsample matrix, f32 (resident)
    # f_ref: (1, Cf, 4*TS)   skip-connection tile (already full resolution)
    # o_ref: (1, Co+Cf, 4*TS)
    x = x_ref[0].astype(jnp.bfloat16)                                   # (C, TS)
    y = jnp.dot(w_ref[...], x, preferred_element_type=jnp.float32)     # (Co, TS)
    y = y + b_ref[...]                                                  # f32

    # x2 nearest upsample, one whole-row group at a time.  A group of GW
    # low-res pixels (whole rows) maps to a contiguous 4*GW chunk of the
    # flattened full-res output, so every store below is a static slice.
    # The duplication matrix is 0/1 and f32, so the f32 conv result is
    # reproduced exactly (no bf16 rounding).
    ts = y.shape[1]
    for g in range(ts // gw):
        chunk = y[:, g * gw:(g + 1) * gw]                               # (Co, GW)
        up = jnp.dot(chunk, d_ref[...],
                     preferred_element_type=jnp.float32)                # (Co, 4GW)
        o_ref[0, 0:co, g * 4 * gw:(g + 1) * 4 * gw] = up.astype(o_ref.dtype)

    # Skip connection -> second half of the channel dim.
    if co % 8 == 0:
        # Sublane-aligned split: route the big passthrough stream around the
        # vector core with a local VMEM->VMEM DMA (frees vld/vst slots).
        pltpu.sync_copy(f_ref.at[0], o_ref.at[0, pl.ds(co, cf)])
    else:
        # Unaligned split (e.g. tiny test channels): plain vector copy.
        o_ref[0, co:, :] = f_ref[0].astype(o_ref.dtype)


# ------------------------------ tiling helpers ------------------------------

def _vmem_limit_bytes():
    """Per-chip VMEM limit request (with headroom), conservative by default."""
    cap = 64 * 1024 * 1024          # v7x physical VMEM per TensorCore
    try:
        info = pltpu.get_tpu_info()
        cap = int(getattr(info, "vmem_capacity_bytes", cap))
    except Exception:
        pass
    return int(min(cap * 3 // 4, 100 * 1024 * 1024))


def _pick_row_tile(h, w, per_lane_bytes, budget_bytes, max_lanes=4096):
    """Largest number of low-res rows per tile such that
       - th divides h (no partial blocks),
       - th*w is a multiple of 128 lanes (lane-dense, blockable),
       - the per-grid-step VMEM footprint stays within budget,
       - the flat tile stays <= max_lanes (bounds the unrolled group loop;
         >=512-lane tiles already sit near the HBM roofline)."""
    feasible = [th for th in range(1, h + 1)
                if h % th == 0 and (th * w) % 128 == 0]
    if not feasible:
        # TODO(synk): for W with no 128-lane-divisible row tile, pad W (or tile
        # the channel dim) instead of one full-extent block.
        return h
    best = feasible[0]
    for th in feasible:
        ts = th * w
        if ts <= max_lanes and ts * per_lane_bytes <= budget_bytes:
            best = th
    return best


def _pick_group_rows(th, w):
    """Rows per upsample group: largest divisor of th with g*w <= 128 lanes.
    Keeps the (GW, 4*GW) duplication matrix tiny and its f32 matmul cost well
    under the HBM roofline even on v5e."""
    target = max(1, 128 // w)
    g = 1
    for cand in range(1, th + 1):
        if th % cand == 0 and cand <= target:
            g = cand
    return g


def _dup_matrix(gw, w, dtype):
    """D[s, c] = 1 iff flat full-res column c of a whole-row group (rows stored
    as (G, 2, 2W)) takes its value from flat low-res pixel s (rows as (G, W))."""
    cols = jnp.arange(4 * gw)
    src = (cols // (4 * w)) * w + (cols % (2 * w)) // 2
    return (jnp.arange(gw)[:, None] == src[None, :]).astype(dtype)


# --------------------------------- wrapper ----------------------------------

def upsample_forward(x, feature_map, weight, bias):
    """UpSample forward.

    x           : (N, C, H, W)           float32
    feature_map : (N, Cf, 2H, 2W)        float32 (skip connection)
    weight      : (C//2, C, 1, 1)        float32 (PyTorch Conv2d weight)
    bias        : (C//2,)                float32
    returns     : (N, C//2 + Cf, 2H, 2W) float32
    """
    n, c, h, w = x.shape
    co = weight.shape[0]
    nf, cf, hf, wf = feature_map.shape
    assert nf == n and hf == 2 * h and wf == 2 * w
    c_out = co + cf

    vmem_limit = _vmem_limit_bytes()
    # Per-step footprint per low-res flat pixel: x tile + feature tile +
    # output tile (all f32, double-buffered) + the f32 conv accumulator.
    per_lane = 4 * (2 * c + 2 * 4 * cf + 2 * 4 * c_out) + 4 * co
    d_reserve = 32 * max(128, w) ** 2          # (GW,4GW) f32, double buffered
    budget = int(vmem_limit * 0.85) - d_reserve - (1 << 20)

    th = _pick_row_tile(h, w, per_lane, budget)
    ts = th * w                                 # low-res pixels per tile
    g_rows = _pick_group_rows(th, w)
    gw = g_rows * w                             # low-res pixels per dup group

    s, s_up = h * w, 4 * h * w
    grid = (n, s // ts)

    # Free reshapes only -- no transposes, no upsampled intermediate in HBM.
    x_flat = x.reshape(n, c, s)
    f_flat = feature_map.reshape(n, cf, s_up)
    w2 = weight.reshape(co, c).astype(jnp.bfloat16)
    b2 = bias.reshape(co, 1).astype(jnp.float32)
    dmat = _dup_matrix(gw, w, jnp.float32)      # tiny, constant, resident

    kernel = functools.partial(_upsample_concat_kernel, co=co, cf=cf, gw=gw)
    out_flat = pl.pallas_call(
        kernel,
        out_shape=jax.ShapeDtypeStruct((n, c_out, s_up), x.dtype),
        grid=grid,
        in_specs=[
            pl.BlockSpec((1, c, ts), lambda ni, si: (ni, 0, si)),
            pl.BlockSpec((co, c), lambda ni, si: (0, 0)),          # resident
            pl.BlockSpec((co, 1), lambda ni, si: (0, 0)),          # resident
            pl.BlockSpec((gw, 4 * gw), lambda ni, si: (0, 0)),     # resident
            pl.BlockSpec((1, cf, 4 * ts), lambda ni, si: (ni, 0, si)),
        ],
        out_specs=pl.BlockSpec((1, c_out, 4 * ts), lambda ni, si: (ni, 0, si)),
        compiler_params=pltpu.CompilerParams(
            dimension_semantics=("parallel", "parallel"),
            vmem_limit_bytes=vmem_limit,
        ),
    )(x_flat, w2, b2, dmat, f_flat)

    return out_flat.reshape(n, c_out, 2 * h, 2 * w)


# ------------------------------ pure-JAX reference --------------------------

def _reference(x, feature_map, weight, bias):
    up = jnp.repeat(jnp.repeat(x, 2, axis=2), 2, axis=3)
    co = weight.shape[0]
    conv = jnp.einsum("oc,nchw->nohw", weight.reshape(co, -1), up)
    conv = conv + bias[None, :, None, None]
    return jnp.concatenate([conv, feature_map], axis=1)


if __name__ == "__main__":
    key = jax.random.PRNGKey(0)
    k1, k2, k3, k4 = jax.random.split(key, 4)

    N, C, H, W = 2, 4, 16, 16
    Co, Cf = C // 2, C // 2

    x = jax.random.normal(k1, (N, C, H, W), dtype=jnp.float32)
    feature_map = jax.random.normal(k2, (N, Cf, 2 * H, 2 * W), dtype=jnp.float32)
    weight = 0.1 * jax.random.normal(k3, (Co, C, 1, 1), dtype=jnp.float32)
    bias = 0.1 * jax.random.normal(k4, (Co,), dtype=jnp.float32)

    out = upsample_forward(x, feature_map, weight, bias)
    jax.block_until_ready(out)

    assert out.shape == (N, Co + Cf, 2 * H, 2 * W)
    ref = _reference(x, feature_map, weight, bias)
    # Conv inputs are cast to bf16 (f32 accumulation); the upsample duplication
    # is exact in f32 -> small tolerance vs the f32 reference.
    assert jnp.allclose(out, ref, atol=2e-2, rtol=2e-2), float(
        jnp.max(jnp.abs(out - ref)))
    print("KERNEL_OK")
</pallas_src>

<mosaic_0001>
module attributes {stable_mosaic.version = 11 : i64} {
  func.func @_upsample_concat_kernel(%arg0: i32, %arg1: i32, %arg2: memref<1x4x256xf32, #tpu.memory_space<vmem>>, %arg3: memref<2x4xbf16, #tpu.memory_space<vmem>>, %arg4: memref<2x1xf32, #tpu.memory_space<vmem>>, %arg5: memref<128x512xf32, #tpu.memory_space<vmem>>, %arg6: memref<1x2x1024xf32, #tpu.memory_space<vmem>>, %arg7: memref<1x4x1024xf32, #tpu.memory_space<vmem>>) attributes {dimension_semantics = [#tpu.dimension_semantics<parallel>, #tpu.dimension_semantics<parallel>], iteration_bounds = array<i64: 2, 1>, scalar_prefetch = 0 : i64, scratch_operands = 0 : i64, tpu.core_type = #tpu.core_type<tc>, window_params = [{transform_indices = @transform_0, window_bounds = array<i64: 1, 4, 256>}, {pipeline_mode = #tpu.pipeline_mode<synchronous>, transform_indices = @transform_1, window_bounds = array<i64: 2, 4>}, {pipeline_mode = #tpu.pipeline_mode<synchronous>, transform_indices = @transform_2, window_bounds = array<i64: 2, 1>}, {pipeline_mode = #tpu.pipeline_mode<synchronous>, transform_indices = @transform_3, window_bounds = array<i64: 128, 512>}, {transform_indices = @transform_4, window_bounds = array<i64: 1, 2, 1024>}, {transform_indices = @transform_5, window_bounds = array<i64: 1, 4, 1024>}]} {
    %c0 = arith.constant 0 : index
    %c0_0 = arith.constant 0 : index
    %c0_1 = arith.constant 0 : index
    %0 = vector.load %arg2[%c0, %c0_0, %c0_1] : memref<1x4x256xf32, #tpu.memory_space<vmem>>, vector<1x4x256xf32>
    %1 = vector.shape_cast %0 : vector<1x4x256xf32> to vector<4x256xf32>
    %2 = arith.truncf %1 : vector<4x256xf32> to vector<4x256xbf16>
    %c0_2 = arith.constant 0 : index
    %c0_3 = arith.constant 0 : index
    %3 = vector.load %arg3[%c0_2, %c0_3] : memref<2x4xbf16, #tpu.memory_space<vmem>>, vector<2x4xbf16>
    %cst = arith.constant dense<0.000000e+00> : vector<2x256xf32>
    %4 = tpu.matmul %3, %2, %cst {dimension_numbers = #tpu.dot_dimension_numbers<[1], [0], [0], [1], [0, 0, 1, 1], [], []>} : vector<2x4xbf16>, vector<4x256xbf16>, vector<2x256xf32> -> vector<2x256xf32>
    %c0_4 = arith.constant 0 : index
    %c0_5 = arith.constant 0 : index
    %5 = vector.load %arg4[%c0_4, %c0_5] : memref<2x1xf32, #tpu.memory_space<vmem>>, vector<2x1xf32>
    %6 = vector.broadcast %5 : vector<2x1xf32> to vector<2x256xf32>
    %7 = arith.addf %4, %6 : vector<2x256xf32>
    %8 = vector.extract_strided_slice %7 {offsets = [0, 0], sizes = [2, 128], strides = [1, 1]} : vector<2x256xf32> to vector<2x128xf32>
    %c0_6 = arith.constant 0 : index
    %c0_7 = arith.constant 0 : index
    %9 = vector.load %arg5[%c0_6, %c0_7] : memref<128x512xf32, #tpu.memory_space<vmem>>, vector<128x512xf32>
    %cst_8 = arith.constant dense<0.000000e+00> : vector<2x512xf32>
    %10 = tpu.matmul %8, %9, %cst_8 {dimension_numbers = #tpu.dot_dimension_numbers<[1], [0], [0], [1], [0, 0, 1, 1], [], []>} : vector<2x128xf32>, vector<128x512xf32>, vector<2x512xf32> -> vector<2x512xf32>
    %c0_9 = arith.constant 0 : index
    %c0_10 = arith.constant 0 : index
    %c0_11 = arith.constant 0 : index
    %11 = vector.load %arg7[%c0_9, %c0_10, %c0_11] : memref<1x4x1024xf32, #tpu.memory_space<vmem>>, vector<1x2x512xf32>
    %12 = vector.shape_cast %11 : vector<1x2x512xf32> to vector<2x512xf32>
    %13 = vector.shape_cast %10 : vector<2x512xf32> to vector<1x2x512xf32>
    tpu.vector_store %arg7[%c0_9, %c0_10, %c0_11], %13 {strides = array<i32>} : memref<1x4x1024xf32, #tpu.memory_space<vmem>>, vector<1x2x512xf32>,
    %14 = vector.extract_strided_slice %7 {offsets = [0, 128], sizes = [2, 128], strides = [1, 1]} : vector<2x256xf32> to vector<2x128xf32>
    %c0_12 = arith.constant 0 : index
    %c0_13 = arith.constant 0 : index
    %15 = vector.load %arg5[%c0_12, %c0_13] : memref<128x512xf32, #tpu.memory_space<vmem>>, vector<128x512xf32>
    %cst_14 = arith.constant dense<0.000000e+00> : vector<2x512xf32>
    %16 = tpu.matmul %14, %15, %cst_14 {dimension_numbers = #tpu.dot_dimension_numbers<[1], [0], [0], [1], [0, 0, 1, 1], [], []>} : vector<2x128xf32>, vector<128x512xf32>, vector<2x512xf32> -> vector<2x512xf32>
    %c0_15 = arith.constant 0 : index
    %c0_16 = arith.constant 0 : index
    %c512 = arith.constant 512 : index
    %17 = vector.load %arg7[%c0_15, %c0_16, %c512] : memref<1x4x1024xf32, #tpu.memory_space<vmem>>, vector<1x2x512xf32>
    %18 = vector.shape_cast %17 : vector<1x2x512xf32> to vector<2x512xf32>
    %19 = vector.shape_cast %16 : vector<2x512xf32> to vector<1x2x512xf32>
    tpu.vector_store %arg7[%c0_15, %c0_16, %c512], %19 {strides = array<i32>} : memref<1x4x1024xf32, #tpu.memory_space<vmem>>, vector<1x2x512xf32>,
    %c0_17 = arith.constant 0 : index
    %c0_18 = arith.constant 0 : index
    %c0_19 = arith.constant 0 : index
    %20 = vector.load %arg6[%c0_17, %c0_18, %c0_19] : memref<1x2x1024xf32, #tpu.memory_space<vmem>>, vector<1x2x1024xf32>
    %21 = vector.shape_cast %20 : vector<1x2x1024xf32> to vector<2x1024xf32>
    %c0_20 = arith.constant 0 : index
    %c2 = arith.constant 2 : index
    %c0_21 = arith.constant 0 : index
    %22 = vector.load %arg7[%c0_20, %c2, %c0_21] : memref<1x4x1024xf32, #tpu.memory_space<vmem>>, vector<1x2x1024xf32>
    %23 = vector.shape_cast %22 : vector<1x2x1024xf32> to vector<2x1024xf32>
    %24 = vector.shape_cast %21 : vector<2x1024xf32> to vector<1x2x1024xf32>
    tpu.vector_store %arg7[%c0_20, %c2, %c0_21], %24 {strides = array<i32>} : memref<1x4x1024xf32, #tpu.memory_space<vmem>>, vector<1x2x1024xf32>,
    return
  }
  func.func @transform_0(%arg0: i32, %arg1: i32) -> (i32, i32, i32) {
    %c0_i32 = arith.constant 0 : i32
    %c0_i32_0 = arith.constant 0 : i32
    return %arg0, %c0_i32, %arg1 : i32, i32, i32
  }
  func.func @transform_1(%arg0: i32, %arg1: i32) -> (i32, i32) {
    %c0_i32 = arith.constant 0 : i32
    %c0_i32_0 = arith.constant 0 : i32
    %c0_i32_1 = arith.constant 0 : i32
    return %c0_i32, %c0_i32_0 : i32, i32
  }
  func.func @transform_2(%arg0: i32, %arg1: i32) -> (i32, i32) {
    %c0_i32 = arith.constant 0 : i32
    %c0_i32_0 = arith.constant 0 : i32
    %c0_i32_1 = arith.constant 0 : i32
    return %c0_i32, %c0_i32_0 : i32, i32
  }
  func.func @transform_3(%arg0: i32, %arg1: i32) -> (i32, i32) {
    %c0_i32 = arith.constant 0 : i32
    %c0_i32_0 = arith.constant 0 : i32
    %c0_i32_1 = arith.constant 0 : i32
    return %c0_i32, %c0_i32_0 : i32, i32
  }
  func.func @transform_4(%arg0: i32, %arg1: i32) -> (i32, i32, i32) {
    %c0_i32 = arith.constant 0 : i32
    %c0_i32_0 = arith.constant 0 : i32
    return %arg0, %c0_i32, %arg1 : i32, i32, i32
  }
  func.func @transform_5(%arg0: i32, %arg1: i32) -> (i32, i32, i32) {
    %c0_i32 = arith.constant 0 : i32
    %c0_i32_0 = arith.constant 0 : i32
    return %arg0, %c0_i32, %arg1 : i32, i32, i32
  }
}

</mosaic_0001>

<llo_original>
// kernel: tpu_custom_call.1
$region0: #{tpu_custom_call.1}
  #allocation0 [shape = 'u32[]', space=smem, size = 0x4, offset = 0x4, fixed_abs, tag = 'smem constant byte address 0x4 - core index']
  #allocation1 [shape = 'u32[72,128]{1,0:T(1,128)}', space=vmem, size = 0x9000, scoped, tag = 'internal scratch']
  %s0 = inlined_call_operand.hbm [shape: f32[2,4,256], index: 0, kind: input, shape index: {}]
  %s1 = inlined_call_operand.vmem [shape: bf16[2,4], index: 1, kind: input, shape index: {}]
  %s2 = inlined_call_operand.vmem [shape: f32[2,1], index: 2, kind: input, shape index: {}]
  %s3 = inlined_call_operand.hbm [shape: f32[128,512], index: 3, kind: input, shape index: {}]
  %s4 = inlined_call_operand.hbm [shape: f32[2,2,1024], index: 4, kind: input, shape index: {}]
  %s5 = inlined_call_operand.hbm [shape: f32[2,4,1024], index: 5, kind: output, shape index: {}]
  %s6 = sld [smem:[#allocation0]]
  $region65: #{tpu_custom_call.1} parent=0
    _
  %s8 = ssub.s32 1, %s6
  %s9 = scalar_select 0, %s8, %s6
  $region1: #{tpu_custom_call.1} parent=0
    #allocation2 [shape = 'u8[8192]{0}', space=vmem, size = 0x2000, scoped, tag = 'input window, operand 0']
    #allocation3 [shape = 's32[2]{0}', space=sflag, size = 0x8, scoped, tag = 'scoped memory for tpu_custom_call.1']
    #allocation4 [shape = 's32[2]{0}', space=sflag, size = 0x8, scoped, tag = 'scoped memory for tpu_custom_call.1']
    #allocation5 [shape = 'u8[262144]{0}', space=vmem, size = 0x40000, scoped, tag = 'input window, operand 3, single buffered']
    #allocation6 [shape = 's32[1]{0}', space=sflag, size = 0x4, scoped, tag = 'scoped memory for tpu_custom_call.1']
    #allocation7 [shape = 'u8[16384]{0}', space=vmem, size = 0x4000, scoped, tag = 'input window, operand 4']
    #allocation8 [shape = 'u8[32768]{0}', space=vmem, size = 0x8000, scoped, tag = 'output window, operand 0']
    %10 = vsyncpa [#allocation3], 0
    %s11 = scalar_lea.sflag [#allocation3], 1
    %12 = vsyncpa %s11, 0
    %13 = vsyncpa [#allocation6], 0
    %14 = vsyncpa [#allocation4], 0
    %s15 = scalar_lea.sflag [#allocation4], 1
    %16 = vsyncpa %s15, 0
    loop: start=0, step=1, limit=4
    $region2: #{tpu_custom_call.1} parent=1 // loop_pre_header
      _
    $region3: #{tpu_custom_call.1} parent=1 // loop_header
      %s18 = sphi 0, %s22
      %p19 = scmp.ge.s32.totalorder %s18, 4
      %s25 = sphi 0, %s37
      %s26 = sphi 0, %s33
      %s27 = sphi 0, %s25
      %s28 = sphi 0, %s26
      %s29 = sphi 0, %s27
      %s30 = sphi 0, %s28
      %s42 = sphi 0, %s44
      %s45 = sphi 0, %s42
      %s46 = sphi 0, %s45
      %s62 = sphi 0, %s46
      %s66 = sphi 0, %s66
      %s68 = sphi 0, %s66
      %s69 = sphi 0, %s68
      %s83 = sphi 0, %s69
      %s87 = sphi 0, %s87
      %s89 = sphi 0, %s87
      %s90 = sphi 0, %s89
      %s104 = sphi 0, %s90
      %s108 = sphi 0, %s108
      %s110 = sphi 0, %s108
      %s111 = sphi 0, %s110
      %s125 = sphi 0, %s111
      %s133 = sphi 0, %s135
      %s136 = sphi 0, %s133
      %s137 = sphi 0, %s136
      %s153 = sphi 0, %s137
      %s161 = sphi 0, %s163
      %s164 = sphi 0, %s161
      %s165 = sphi 0, %s164
      %s181 = sphi 0, %s165
    $region4: #{tpu_custom_call.1} parent=1 // loop_header_branch
      %21 = sbr.rel (%p19) target = $region8
    $region5: #{tpu_custom_call.1} parent=1 // loop_body
      %s23 = ssub.s32 %s18, 1
      %s24 = ssub.s32 %s18, 2
      %s31 = sadd.s32 1, %s26
      %p32 = scmp.ge.s32.totalorder %s31, 1
      %s33 = scalar_select %p32, 0, %s31
      %s34 = sadd.s32 1, %s25
      %s35 = scalar_select %p32, %s34, %s25
      %p36 = scmp.ge.s32.totalorder %s35, 2
      %s37 = scalar_select %p36, 0, %s35
      %s38 = ssub.s32 %s25, %s37
      %s39 = ssub.s32 %s26, %s33
      %s40 = sor.u32 %s38, %s39
      %p41 = scmp.eq.s32.totalorder %s40, 0
      %s43 = sadd.s32 %s42, 1
      %s44 = scalar_select %p41, %s42, %s43
      %p47 = pneg %p41
      %p48 = scmp.eq.s32.totalorder %s18, 1
      %p49 = por %p47, %p48
      %p50 = scmp.ne.s32.totalorder %s42, %s45
      %p51 = scmp.eq.s32.totalorder %s18, 0
      %p52 = por %p50, %p51
      %p53 = scmp.ne.s32.totalorder %s42, %s45
      %p54 = scmp.eq.s32.totalorder %s23, 1
      %p55 = por %p53, %p54
      %p56 = scmp.ne.s32.totalorder %s45, %s46
      %p57 = scmp.eq.s32.totalorder %s23, 0
      %p58 = por %p56, %p57
      %p59 = scmp.ne.s32.totalorder %s45, %s46
      %p60 = scmp.eq.s32.totalorder %s24, 1
      %p61 = por %p59, %p60
      %p63 = scmp.ne.s32.totalorder %s46, %s62
      %p64 = scmp.eq.s32.totalorder %s24, 0
      %p65 = por %p63, %p64
      %s67 = sadd.s32 %s66, 1
      %p70 = scmp.eq.s32.totalorder %s18, 1
      %p71 = scmp.ne.s32.totalorder %s66, %s68
      %p72 = scmp.eq.s32.totalorder %s18, 0
      %p73 = por %p71, %p72
      %p74 = scmp.ne.s32.totalorder %s66, %s68
      %p75 = scmp.eq.s32.totalorder %s23, 1
      %p76 = por %p74, %p75
      %p77 = scmp.ne.s32.totalorder %s68, %s69
      %p78 = scmp.eq.s32.totalorder %s23, 0
      %p79 = por %p77, %p78
      %p80 = scmp.ne.s32.totalorder %s68, %s69
      %p81 = scmp.eq.s32.totalorder %s24, 1
      %p82 = por %p80, %p81
      %p84 = scmp.ne.s32.totalorder %s69, %s83
      %p85 = scmp.eq.s32.totalorder %s24, 0
      %p86 = por %p84, %p85
      %s88 = sadd.s32 %s87, 1
      %p91 = scmp.eq.s32.totalorder %s18, 1
      %p92 = scmp.ne.s32.totalorder %s87, %s89
      %p93 = scmp.eq.s32.totalorder %s18, 0
      %p94 = por %p92, %p93
      %p95 = scmp.ne.s32.totalorder %s87, %s89
      %p96 = scmp.eq.s32.totalorder %s23, 1
      %p97 = por %p95, %p96
      %p98 = scmp.ne.s32.totalorder %s89, %s90
      %p99 = scmp.eq.s32.totalorder %s23, 0
      %p100 = por %p98, %p99
      %p101 = scmp.ne.s32.totalorder %s89, %s90
      %p102 = scmp.eq.s32.totalorder %s24, 1
      %p103 = por %p101, %p102
      %p105 = scmp.ne.s32.totalorder %s90, %s104
      %p106 = scmp.eq.s32.totalorder %s24, 0
      %p107 = por %p105, %p106
      %s109 = sadd.s32 %s108, 1
      %p112 = scmp.eq.s32.totalorder %s18, 1
      %p113 = scmp.ne.s32.totalorder %s108, %s110
      %p114 = scmp.eq.s32.totalorder %s18, 0
      %p115 = por %p113, %p114
      %p116 = scmp.ne.s32.totalorder %s108, %s110
      %p117 = scmp.eq.s32.totalorder %s23, 1
      %p118 = por %p116, %p117
      %p119 = scmp.ne.s32.totalorder %s110, %s111
      %p120 = scmp.eq.s32.totalorder %s23, 0
      %p121 = por %p119, %p120
      %p122 = scmp.ne.s32.totalorder %s110, %s111
      %p123 = scmp.eq.s32.totalorder %s24, 1
      %p124 = por %p122, %p123
      %p126 = scmp.ne.s32.totalorder %s111, %s125
      %p127 = scmp.eq.s32.totalorder %s24, 0
      %p128 = por %p126, %p127
      %s129 = ssub.s32 %s25, %s37
      %s130 = ssub.s32 %s26, %s33
      %s131 = sor.u32 %s129, %s130
      %p132 = scmp.eq.s32.totalorder %s131, 0
      %s134 = sadd.s32 %s133, 1
      %s135 = scalar_select %p132, %s133, %s134
      %p138 = pneg %p132
      %p139 = scmp.eq.s32.totalorder %s18, 1
      %p140 = por %p138, %p139
      %p141 = scmp.ne.s32.totalorder %s133, %s136
      %p142 = scmp.eq.s32.totalorder %s18, 0
      %p143 = por %p141, %p142
      %p144 = scmp.ne.s32.totalorder %s133, %s136
      %p145 = scmp.eq.s32.totalorder %s23, 1
      %p146 = por %p144, %p145
      %p147 = scmp.ne.s32.totalorder %s136, %s137
      %p148 = scmp.eq.s32.totalorder %s23, 0
      %p149 = por %p147, %p148
      %p150 = scmp.ne.s32.totalorder %s136, %s137
      %p151 = scmp.eq.s32.totalorder %s24, 1
      %p152 = por %p150, %p151
      %p154 = scmp.ne.s32.totalorder %s137, %s153
      %p155 = scmp.eq.s32.totalorder %s24, 0
      %p156 = por %p154, %p155
      %s157 = ssub.s32 %s25, %s37
      %s158 = ssub.s32 %s26, %s33
      %s159 = sor.u32 %s157, %s158
      %p160 = scmp.eq.s32.totalorder %s159, 0
      %s162 = sadd.s32 %s161, 1
      %s163 = scalar_select %p160, %s161, %s162
      %p166 = pneg %p160
      %p167 = scmp.eq.s32.totalorder %s18, 1
      %p168 = por %p166, %p167
      %p169 = scmp.ne.s32.totalorder %s161, %s164
      %p170 = scmp.eq.s32.totalorder %s18, 0
      %p171 = por %p169, %p170
      %p172 = scmp.ne.s32.totalorder %s161, %s164
      %p173 = scmp.eq.s32.totalorder %s23, 1
      %p174 = por %p172, %p173
      %p175 = scmp.ne.s32.totalorder %s164, %s165
      %p176 = scmp.eq.s32.totalorder %s23, 0
      %p177 = por %p175, %p176
      %p178 = scmp.ne.s32.totalorder %s164, %s165
      %p179 = scmp.eq.s32.totalorder %s24, 1
      %p180 = por %p178, %p179
      %p182 = scmp.ne.s32.totalorder %s165, %s181
      %p183 = scmp.eq.s32.totalorder %s24, 0
      %p184 = por %p182, %p183
      %p185 = scmp.le.s32.totalorder 1, %s18
      %p186 = scmp.lt.s32.totalorder %s18, 3
      %p187 = pnand %p185, %p186
      %p188 = pneg %p187
      // Predicated region
      $region9: #{tpu_custom_call.1} parent=5 // pred_check
        _
      $region10: #{tpu_custom_call.1} parent=5 // pred_check_branch
        %190 = sbr.rel (%p187) target = $region12
      $region11: #{tpu_custom_call.1} parent=5 // pred_region
        %s191 = ssub.s32 %s18, 1
        // Predicated region
        $region13: #{tpu_custom_call.1} parent=11 // pred_check
          %p192 = pneg %p79
        $region14: #{tpu_custom_call.1} parent=11 // pred_check_branch
          %194 = sbr.rel (%p192) target = $region16
        $region15: #{tpu_custom_call.1} parent=11 // pred_region
          _
        $region16: #{tpu_custom_call.1} parent=11 // pred_fallthru
          _
        // Predicated region
        $region17: #{tpu_custom_call.1} parent=11 // pred_check
          %p195 = pneg %p100
        $region18: #{tpu_custom_call.1} parent=11 // pred_check_branch
          %197 = sbr.rel (%p195) target = $region20
        $region19: #{tpu_custom_call.1} parent=11 // pred_region
          _
        $region20: #{tpu_custom_call.1} parent=11 // pred_fallthru
          _
        // Predicated region
        $region21: #{tpu_custom_call.1} parent=11 // pred_check
          %p198 = pneg %p121
        $region22: #{tpu_custom_call.1} parent=11 // pred_check_branch
          %200 = sbr.rel (%p198) target = $region24
        $region23: #{tpu_custom_call.1} parent=11 // pred_region
          %202 = vsyncadd [#allocation6], 0
          %s203 = sshll.u32 %s3, 4
          %s204 = int_to_ptr.hbm [resolvable:$true] %s203
          %s205 = sshll.u32 [#allocation5], 4
          %s206 = int_to_ptr.vmem [resolvable:$true] %s205
          %211 = dma.hbm_to_vmem [thread:$0]  %s204, 8192, %s206, [#allocation6], 512, 512, 32
        $region24: #{tpu_custom_call.1} parent=11 // pred_fallthru
          _
      $region12: #{tpu_custom_call.1} parent=5 // pred_fallthru
        _
      %p212 = scmp.lt.s32.totalorder %s18, 2
      // Predicated region
      $region25: #{tpu_custom_call.1} parent=5 // pred_check
        %p213 = pneg %p212
      $region26: #{tpu_custom_call.1} parent=5 // pred_check_branch
        %215 = sbr.rel (%p213) target = $region28
      $region27: #{tpu_custom_call.1} parent=5 // pred_region
        // Predicated region
        $region29: #{tpu_custom_call.1} parent=27 // pred_check
          %p216 = pneg %p52
        $region30: #{tpu_custom_call.1} parent=27 // pred_check_branch
          %218 = sbr.rel (%p216) target = $region32
        $region31: #{tpu_custom_call.1} parent=27 // pred_region
          %s219 = sand.u32 %s18, 1
          %s220 = scalar_lea.sflag [#allocation3], %s219
          %s221 = sand.u32 %s42, 1
          %s222 = smul.addr %s221, 8
          %s223 = scalar_lea.vmem [#allocation2], %s222
          %s224 = smul.u32 2, %s26
          %226 = vsyncadd %s220, 0
          %s227 = smul.addr %s25, 2
          %s228 = sadd.s32 %s224, %s227
          %s229 = smul.addr %s228, 4
          %s230 = scalar_lea.hbm %s0, %s229
          %s232 = sshll.u32 %s230, 4
          %s233 = int_to_ptr.hbm [resolvable:$true] %s232
          %s234 = sshll.u32 %s223, 4
          %s235 = int_to_ptr.vmem [resolvable:$true] %s234
          %237 = dma.hbm_to_vmem [thread:$0]  %s233, 128, %s235, %s220
        $region32: #{tpu_custom_call.1} parent=27 // pred_fallthru
          _
        // Predicated region
        $region33: #{tpu_custom_call.1} parent=27 // pred_check
          %p238 = pneg %p143
        $region34: #{tpu_custom_call.1} parent=27 // pred_check_branch
          %240 = sbr.rel (%p238) target = $region36
        $region35: #{tpu_custom_call.1} parent=27 // pred_region
          %s241 = sand.u32 %s18, 1
          %s242 = scalar_lea.sflag [#allocation3], %s241
          %s243 = sand.u32 %s133, 1
          %s244 = smul.addr %s243, 16
          %s245 = scalar_lea.vmem [#allocation7], %s244
          %s246 = smul.u32 8, %s26
          %248 = vsyncadd %s242, 0
          %s249 = smul.addr %s25, 8
          %s250 = sadd.s32 %s246, %s249
          %s251 = smul.addr %s250, 2
          %s252 = scalar_lea.hbm %s4, %s251
          %s254 = sshll.u32 %s252, 4
          %s255 = int_to_ptr.hbm [resolvable:$true] %s254
          %s256 = sshll.u32 %s245, 4
          %s257 = int_to_ptr.vmem [resolvable:$true] %s256
          %259 = dma.hbm_to_vmem [thread:$0]  %s255, 256, %s257, %s242
        $region36: #{tpu_custom_call.1} parent=27 // pred_fallthru
          _
      $region28: #{tpu_custom_call.1} parent=5 // pred_fallthru
        _
      %p260 = scmp.le.s32.totalorder 1, %s18
      %p261 = scmp.lt.s32.totalorder %s18, 3
      %p262 = pnand %p260, %p261
      %p263 = pneg %p262
      // Predicated region
      $region37: #{tpu_custom_call.1} parent=5 // pred_check
        _
      $region38: #{tpu_custom_call.1} parent=5 // pred_check_branch
        %265 = sbr.rel (%p262) target = $region40
      $region39: #{tpu_custom_call.1} parent=5 // pred_region
        %s266 = ssub.s32 %s18, 1
        %s267 = sand.u32 %s23, 1
        %s268 = scalar_lea.sflag [#allocation3], %s267
        %s269 = sand.u32 %s45, 1
        %s270 = smul.addr %s269, 8
        %s271 = scalar_lea.vmem [#allocation2], %s270
        // Predicated region
        $region41: #{tpu_custom_call.1} parent=39 // pred_check
          %p272 = pneg %p58
        $region42: #{tpu_custom_call.1} parent=39 // pred_check_branch
          %274 = sbr.rel (%p272) target = $region44
        $region43: #{tpu_custom_call.1} parent=39 // pred_region
          %276 = dma.done %s268, 128
        $region44: #{tpu_custom_call.1} parent=39 // pred_fallthru
          _
        // Predicated region
        $region45: #{tpu_custom_call.1} parent=39 // pred_check
          %p277 = pneg %p121
        $region46: #{tpu_custom_call.1} parent=39 // pred_check_branch
          %279 = sbr.rel (%p277) target = $region48
        $region47: #{tpu_custom_call.1} parent=39 // pred_region
          %281 = dma.done [#allocation6], 8192
        $region48: #{tpu_custom_call.1} parent=39 // pred_fallthru
          _
        %s282 = sand.u32 %s23, 1
        %s283 = scalar_lea.sflag [#allocation3], %s282
        %s284 = sand.u32 %s136, 1
        %s285 = smul.addr %s284, 16
        %s286 = scalar_lea.vmem [#allocation7], %s285
        // Predicated region
        $region49: #{tpu_custom_call.1} parent=39 // pred_check
          %p287 = pneg %p149
        $region50: #{tpu_custom_call.1} parent=39 // pred_check_branch
          %289 = sbr.rel (%p287) target = $region52
        $region51: #{tpu_custom_call.1} parent=39 // pred_region
          %291 = dma.done %s283, 256
        $region52: #{tpu_custom_call.1} parent=39 // pred_fallthru
          _
        %s292 = sand.u32 %s23, 1
        %s293 = scalar_lea.sflag [#allocation3], %s292
        %s294 = sand.u32 %s45, 1
        %s295 = smul.addr %s294, 8
        %s296 = scalar_lea.vmem [#allocation2], %s295
        %p297 = pneg %p58
        %p298 = pneg %p55
        %p299 = pneg %p79
        %p300 = pneg %p76
        %p301 = pneg %p100
        %p302 = pneg %p97
        %p303 = pneg %p121
        %p304 = pneg %p118
        %s305 = sand.u32 %s23, 1
        %s306 = scalar_lea.sflag [#allocation3], %s305
        %s307 = sand.u32 %s136, 1
        %s308 = smul.addr %s307, 16
        %s309 = scalar_lea.vmem [#allocation7], %s308
        %p310 = pneg %p149
        %p311 = pneg %p146
        %p312 = pneg %p177
        %p313 = pneg %p174
        %s314 = sand.u32 %s164, 1
        %s315 = scalar_lea.sflag [#allocation4], %s314
        %s316 = sand.u32 %s164, 1
        %s317 = smul.addr %s316, 32
        %s318 = scalar_lea.vmem [#allocation8], %s317
        %s319 = smul.u32 2, %s28
        %s320 = smul.u32 8, %s28
        %s321 = smul.u32 8, %s28
        %v323 = vld [vmem:[%s271] sm:$0xff]
        %325 = vst [vmem:[#allocation1] ss:$2 sm:$0xff] %v323
        %v326 = vld.sshfl [vmem:[#allocation1] sm:$0xff pattern:$0x75316420]
        %v327 = vld.sshfl [vmem:[#allocation1 + $0x8] sm:$0xff pattern:$0x75316420]
        %v330 = vpack.c.bf16 %v326, %v326
        %v331 = vpack.c.bf16 %v327, %v327
        %v332 = vld [vmem:[%s1] sm:$0x1]
        %v333 = vld [vmem:[%s2] sm:$0x3]
        %335 = vset.pattern.permute.xlu0 0
        %336 = vperm.xlu0 %335, %v333
        %v337 = vpop.permute.xlu0 %336
        %vm339 = vcmask 31744
        %v341 = vsel %vm339, %v332, 0
        %vm343 = vcmask 1041408
        %v345 = vsel %vm343, %v330, 0
        %v348 = vsel %vm343, %v331, 0
        %350 = vmatpush.bf16.msra.mxu0 0
        %351 = vmatpush.bf16.msra.mxu0 0
        %352 = vmatpush.bf16.msra.mxu0 0
        %353 = vmatpush.bf16.msra.mxu0 0
        %354 = vmatpush.bf16.msra.mxu0 0
        %355 = vmatpush.bf16.msra.mxu0 0
        %356 = vmatpush.bf16.msra.mxu0 0
        %357 = vmatpush.bf16.msra.mxu0 %v345
        %358 = vmatmul.bf16.gmra.mxu0 %v341
        %v359 = vpop.f32.mrf.mxu0
        %v360 = vadd.f32 %v337, %v359
        %v361 = vpop.f32.mrf.mxu0
        %362 = vdwg.mxu0
        %363 = vmatpush.bf16.msra.mxu0 0
        %364 = vmatpush.bf16.msra.mxu0 0
        %365 = vmatpush.bf16.msra.mxu0 0
        %366 = vmatpush.bf16.msra.mxu0 0
        %367 = vmatpush.bf16.msra.mxu0 0
        %368 = vmatpush.bf16.msra.mxu0 0
        %369 = vmatpush.bf16.msra.mxu0 0
        %370 = vmatpush.bf16.msra.mxu0 %v348
        %371 = vmatmul.bf16.gmra.mxu0 %v341
        %v372 = vpop.f32.mrf.mxu0
        %v373 = vadd.f32 %v337, %v372
        %v374 = vpop.f32.mrf.mxu0
        %375 = vdwg.mxu0
        %v376 = vld [vmem:[#allocation5] sm:$0xff]
        %v377 = vld [vmem:[#allocation5 + $0x8] sm:$0xff]
        %v378 = vld [vmem:[#allocation5 + $0x10] sm:$0xff]
        %v379 = vld [vmem:[#allocation5 + $0x18] sm:$0xff]
        %v380 = vld [vmem:[#allocation5 + $0x20] sm:$0xff]
        %v381 = vld [vmem:[#allocation5 + $0x28] sm:$0xff]
        %v382 = vld [vmem:[#allocation5 + $0x30] sm:$0xff]
        %v383 = vld [vmem:[#allocation5 + $0x38] sm:$0xff]
        %v384 = vld [vmem:[#allocation5 + $0x40] sm:$0xff]
        %v385 = vld [vmem:[#allocation5 + $0x48] sm:$0xff]
        %v386 = vld [vmem:[#allocation5 + $0x50] sm:$0xff]
        %v387 = vld [vmem:[#allocation5 + $0x58] sm:$0xff]
        %v388 = vld [vmem:[#allocation5 + $0x60] sm:$0xff]
        %v389 = vld [vmem:[#allocation5 + $0x68] sm:$0xff]
        %v390 = vld [vmem:[#allocation5 + $0x70] sm:$0xff]
        %v391 = vld [vmem:[#allocation5 + $0x78] sm:$0xff]
        %v392 = vld [vmem:[#allocation5 + $0x80] sm:$0xff]
        %v393 = vld [vmem:[#allocation5 + $0x88] sm:$0xff]
        %v394 = vld [vmem:[#allocation5 + $0x90] sm:$0xff]
        %v395 = vld [vmem:[#allocation5 + $0x98] sm:$0xff]
        %v396 = vld [vmem:[#allocation5 + $0xa0] sm:$0xff]
        %v397 = vld [vmem:[#allocation5 + $0xa8] sm:$0xff]
        %v398 = vld [vmem:[#allocation5 + $0xb0] sm:$0xff]
        %v399 = vld [vmem:[#allocation5 + $0xb8] sm:$0xff]
        %v400 = vld [vmem:[#allocation5 + $0xc0] sm:$0xff]
        %v401 = vld [vmem:[#allocation5 + $0xc8] sm:$0xff]
        %v402 = vld [vmem:[#allocation5 + $0xd0] sm:$0xff]
        %v403 = vld [vmem:[#allocation5 + $0xd8] sm:$0xff]
        %v404 = vld [vmem:[#allocation5 + $0xe0] sm:$0xff]
        %v405 = vld [vmem:[#allocation5 + $0xe8] sm:$0xff]
        %v406 = vld [vmem:[#allocation5 + $0xf0] sm:$0xff]
        %v407 = vld [vmem:[#allocation5 + $0xf8] sm:$0xff]
        %v408 = vld [vmem:[#allocation5 + $0x100] sm:$0xff]
        %v409 = vld [vmem:[#allocation5 + $0x108] sm:$0xff]
        %v410 = vld [vmem:[#allocation5 + $0x110] sm:$0xff]
        %v411 = vld [vmem:[#allocation5 + $0x118] sm:$0xff]
        %v412 = vld [vmem:[#allocation5 + $0x120] sm:$0xff]
        %v413 = vld [vmem:[#allocation5 + $0x128] sm:$0xff]
        %v414 = vld [vmem:[#allocation5 + $0x130] sm:$0xff]
        %v415 = vld [vmem:[#allocation5 + $0x138] sm:$0xff]
        %v416 = vld [vmem:[#allocation5 + $0x140] sm:$0xff]
        %v417 = vld [vmem:[#allocation5 + $0x148] sm:$0xff]
        %v418 = vld [vmem:[#allocation5 + $0x150] sm:$0xff]
        %v419 = vld [vmem:[#allocation5 + $0x158] sm:$0xff]
        %v420 = vld [vmem:[#allocation5 + $0x160] sm:$0xff]
        %v421 = vld [vmem:[#allocation5 + $0x168] sm:$0xff]
        %v422 = vld [vmem:[#allocation5 + $0x170] sm:$0xff]
        %v423 = vld [vmem:[#allocation5 + $0x178] sm:$0xff]
        %v424 = vld [vmem:[#allocation5 + $0x180] sm:$0xff]
        %v425 = vld [vmem:[#allocation5 + $0x188] sm:$0xff]
        %v426 = vld [vmem:[#allocation5 + $0x190] sm:$0xff]
        %v427 = vld [vmem:[#allocation5 + $0x198] sm:$0xff]
        %v428 = vld [vmem:[#allocation5 + $0x1a0] sm:$0xff]
        %v429 = vld [vmem:[#allocation5 + $0x1a8] sm:$0xff]
        %v430 = vld [vmem:[#allocation5 + $0x1b0] sm:$0xff]
        %v431 = vld [vmem:[#allocation5 + $0x1b8] sm:$0xff]
        %v432 = vld [vmem:[#allocation5 + $0x1c0] sm:$0xff]
        %v433 = vld [vmem:[#allocation5 + $0x1c8] sm:$0xff]
        %v434 = vld [vmem:[#allocation5 + $0x1d0] sm:$0xff]
        %v435 = vld [vmem:[#allocation5 + $0x1d8] sm:$0xff]
        %v436 = vld [vmem:[#allocation5 + $0x1e0] sm:$0xff]
        %v437 = vld [vmem:[#allocation5 + $0x1e8] sm:$0xff]
        %v438 = vld [vmem:[#allocation5 + $0x1f0] sm:$0xff]
        %v439 = vld [vmem:[#allocation5 + $0x1f8] sm:$0xff]
        %440 = vmatpush.msra.mxu0 %v436
        %441 = vmatpush.msra.mxu0 %v432
        %442 = vmatpush.msra.mxu0 %v428
        %443 = vmatpush.msra.mxu0 %v424
        %444 = vmatpush.msra.mxu0 %v420
        %445 = vmatpush.msra.mxu0 %v416
        %446 = vmatpush.msra.mxu0 %v412
        %447 = vmatpush.msra.mxu0 %v408
        %448 = vmatpush.msra.mxu0 %v404
        %449 = vmatpush.msra.mxu0 %v400
        %450 = vmatpush.msra.mxu0 %v396
        %451 = vmatpush.msra.mxu0 %v392
        %452 = vmatpush.msra.mxu0 %v388
        %453 = vmatpush.msra.mxu0 %v384
        %454 = vmatpush.msra.mxu0 %v380
        %455 = vmatpush.msra.mxu0 %v376
        %456 = vmatmul.f32.gmra.mxu0 %v360
        %v457 = vpop.f32.mrf.mxu0
        %v458 = vadd.f32 0.0, %v457
        %459 = vdwg.mxu0
        %460 = vmatpush.msra.mxu0 %v437
        %461 = vmatpush.msra.mxu0 %v433
        %462 = vmatpush.msra.mxu0 %v429
        %463 = vmatpush.msra.mxu0 %v425
        %464 = vmatpush.msra.mxu0 %v421
        %465 = vmatpush.msra.mxu0 %v417
        %466 = vmatpush.msra.mxu0 %v413
        %467 = vmatpush.msra.mxu0 %v409
        %468 = vmatpush.msra.mxu0 %v405
        %469 = vmatpush.msra.mxu0 %v401
        %470 = vmatpush.msra.mxu0 %v397
        %471 = vmatpush.msra.mxu0 %v393
        %472 = vmatpush.msra.mxu0 %v389
        %473 = vmatpush.msra.mxu0 %v385
        %474 = vmatpush.msra.mxu0 %v381
        %475 = vmatpush.msra.mxu0 %v377
        %476 = vmatmul.f32.gmra.mxu0 %v360
        %v477 = vpop.f32.mrf.mxu0
        %v478 = vadd.f32 0.0, %v477
        %479 = vdwg.mxu0
        %480 = vmatpush.msra.mxu0 %v438
        %481 = vmatpush.msra.mxu0 %v434
        %482 = vmatpush.msra.mxu0 %v430
        %483 = vmatpush.msra.mxu0 %v426
        %484 = vmatpush.msra.mxu0 %v422
        %485 = vmatpush.msra.mxu0 %v418
        %486 = vmatpush.msra.mxu0 %v414
        %487 = vmatpush.msra.mxu0 %v410
        %488 = vmatpush.msra.mxu0 %v406
        %489 = vmatpush.msra.mxu0 %v402
        %490 = vmatpush.msra.mxu0 %v398
        %491 = vmatpush.msra.mxu0 %v394
        %492 = vmatpush.msra.mxu0 %v390
        %493 = vmatpush.msra.mxu0 %v386
        %494 = vmatpush.msra.mxu0 %v382
        %495 = vmatpush.msra.mxu0 %v378
        %496 = vmatmul.f32.gmra.mxu0 %v360
        %v497 = vpop.f32.mrf.mxu0
        %v498 = vadd.f32 0.0, %v497
        %499 = vdwg.mxu0
        %500 = vmatpush.msra.mxu0 %v439
        %501 = vmatpush.msra.mxu0 %v435
        %502 = vmatpush.msra.mxu0 %v431
        %503 = vmatpush.msra.mxu0 %v427
        %504 = vmatpush.msra.mxu0 %v423
        %505 = vmatpush.msra.mxu0 %v419
        %506 = vmatpush.msra.mxu0 %v415
        %507 = vmatpush.msra.mxu0 %v411
        %508 = vmatpush.msra.mxu0 %v407
        %509 = vmatpush.msra.mxu0 %v403
        %510 = vmatpush.msra.mxu0 %v399
        %511 = vmatpush.msra.mxu0 %v395
        %512 = vmatpush.msra.mxu0 %v391
        %513 = vmatpush.msra.mxu0 %v387
        %514 = vmatpush.msra.mxu0 %v383
        %515 = vmatpush.msra.mxu0 %v379
        %516 = vmatmul.f32.gmra.mxu0 %v360
        %v517 = vpop.f32.mrf.mxu0
        %v518 = vadd.f32 0.0, %v517
        %519 = vdwg.mxu0
        %v524 = vrot.slane %v478, 4
        %v525 = vrot.slane %v518, 4
        %vm526 = vcmask 1043456
        %v527 = vsel %vm526, %v458, %v524
        %v528 = vsel %vm526, %v498, %v525
        %531 = vst [vmem:[%s318] sm:$0x33] %v527
        %532 = vst [vmem:[%s318 + $0x8] sm:$0x33] %v528
        %v533 = vld [vmem:[#allocation5] sm:$0xff]
        %v534 = vld [vmem:[#allocation5 + $0x8] sm:$0xff]
        %v535 = vld [vmem:[#allocation5 + $0x10] sm:$0xff]
        %v536 = vld [vmem:[#allocation5 + $0x18] sm:$0xff]
        %v537 = vld [vmem:[#allocation5 + $0x20] sm:$0xff]
        %v538 = vld [vmem:[#allocation5 + $0x28] sm:$0xff]
        %v539 = vld [vmem:[#allocation5 + $0x30] sm:$0xff]
        %v540 = vld [vmem:[#allocation5 + $0x38] sm:$0xff]
        %v541 = vld [vmem:[#allocation5 + $0x40] sm:$0xff]
        %v542 = vld [vmem:[#allocation5 + $0x48] sm:$0xff]
        %v543 = vld [vmem:[#allocation5 + $0x50] sm:$0xff]
        %v544 = vld [vmem:[#allocation5 + $0x58] sm:$0xff]
        %v545 = vld [vmem:[#allocation5 + $0x60] sm:$0xff]
        %v546 = vld [vmem:[#allocation5 + $0x68] sm:$0xff]
        %v547 = vld [vmem:[#allocation5 + $0x70] sm:$0xff]
        %v548 = vld [vmem:[#allocation5 + $0x78] sm:$0xff]
        %v549 = vld [vmem:[#allocation5 + $0x80] sm:$0xff]
        %v550 = vld [vmem:[#allocation5 + $0x88] sm:$0xff]
        %v551 = vld [vmem:[#allocation5 + $0x90] sm:$0xff]
        %v552 = vld [vmem:[#allocation5 + $0x98] sm:$0xff]
        %v553 = vld [vmem:[#allocation5 + $0xa0] sm:$0xff]
        %v554 = vld [vmem:[#allocation5 + $0xa8] sm:$0xff]
        %v555 = vld [vmem:[#allocation5 + $0xb0] sm:$0xff]
        %v556 = vld [vmem:[#allocation5 + $0xb8] sm:$0xff]
        %v557 = vld [vmem:[#allocation5 + $0xc0] sm:$0xff]
        %v558 = vld [vmem:[#allocation5 + $0xc8] sm:$0xff]
        %v559 = vld [vmem:[#allocation5 + $0xd0] sm:$0xff]
        %v560 = vld [vmem:[#allocation5 + $0xd8] sm:$0xff]
        %v561 = vld [vmem:[#allocation5 + $0xe0] sm:$0xff]
        %v562 = vld [vmem:[#allocation5 + $0xe8] sm:$0xff]
        %v563 = vld [vmem:[#allocation5 + $0xf0] sm:$0xff]
        %v564 = vld [vmem:[#allocation5 + $0xf8] sm:$0xff]
        %v565 = vld [vmem:[#allocation5 + $0x100] sm:$0xff]
        %v566 = vld [vmem:[#allocation5 + $0x108] sm:$0xff]
        %v567 = vld [vmem:[#allocation5 + $0x110] sm:$0xff]
        %v568 = vld [vmem:[#allocation5 + $0x118] sm:$0xff]
        %v569 = vld [vmem:[#allocation5 + $0x120] sm:$0xff]
        %v570 = vld [vmem:[#allocation5 + $0x128] sm:$0xff]
        %v571 = vld [vmem:[#allocation5 + $0x130] sm:$0xff]
        %v572 = vld [vmem:[#allocation5 + $0x138] sm:$0xff]
        %v573 = vld [vmem:[#allocation5 + $0x140] sm:$0xff]
        %v574 = vld [vmem:[#allocation5 + $0x148] sm:$0xff]
        %v575 = vld [vmem:[#allocation5 + $0x150] sm:$0xff]
        %v576 = vld [vmem:[#allocation5 + $0x158] sm:$0xff]
        %v577 = vld [vmem:[#allocation5 + $0x160] sm:$0xff]
        %v578 = vld [vmem:[#allocation5 + $0x168] sm:$0xff]
        %v579 = vld [vmem:[#allocation5 + $0x170] sm:$0xff]
        %v580 = vld [vmem:[#allocation5 + $0x178] sm:$0xff]
        %v581 = vld [vmem:[#allocation5 + $0x180] sm:$0xff]
        %v582 = vld [vmem:[#allocation5 + $0x188] sm:$0xff]
        %v583 = vld [vmem:[#allocation5 + $0x190] sm:$0xff]
        %v584 = vld [vmem:[#allocation5 + $0x198] sm:$0xff]
        %v585 = vld [vmem:[#allocation5 + $0x1a0] sm:$0xff]
        %v586 = vld [vmem:[#allocation5 + $0x1a8] sm:$0xff]
        %v587 = vld [vmem:[#allocation5 + $0x1b0] sm:$0xff]
        %v588 = vld [vmem:[#allocation5 + $0x1b8] sm:$0xff]
        %v589 = vld [vmem:[#allocation5 + $0x1c0] sm:$0xff]
        %v590 = vld [vmem:[#allocation5 + $0x1c8] sm:$0xff]
        %v591 = vld [vmem:[#allocation5 + $0x1d0] sm:$0xff]
        %v592 = vld [vmem:[#allocation5 + $0x1d8] sm:$0xff]
        %v593 = vld [vmem:[#allocation5 + $0x1e0] sm:$0xff]
        %v594 = vld [vmem:[#allocation5 + $0x1e8] sm:$0xff]
        %v595 = vld [vmem:[#allocation5 + $0x1f0] sm:$0xff]
        %v596 = vld [vmem:[#allocation5 + $0x1f8] sm:$0xff]
        %597 = vmatpush.msra.mxu0 %v593
        %598 = vmatpush.msra.mxu0 %v589
        %599 = vmatpush.msra.mxu0 %v585
        %600 = vmatpush.msra.mxu0 %v581
        %601 = vmatpush.msra.mxu0 %v577
        %602 = vmatpush.msra.mxu0 %v573
        %603 = vmatpush.msra.mxu0 %v569
        %604 = vmatpush.msra.mxu0 %v565
        %605 = vmatpush.msra.mxu0 %v561
        %606 = vmatpush.msra.mxu0 %v557
        %607 = vmatpush.msra.mxu0 %v553
        %608 = vmatpush.msra.mxu0 %v549
        %609 = vmatpush.msra.mxu0 %v545
        %610 = vmatpush.msra.mxu0 %v541
        %611 = vmatpush.msra.mxu0 %v537
        %612 = vmatpush.msra.mxu0 %v533
        %613 = vmatmul.f32.gmra.mxu0 %v373
        %v614 = vpop.f32.mrf.mxu0
        %v615 = vadd.f32 0.0, %v614
        %616 = vdwg.mxu0
        %617 = vmatpush.msra.mxu0 %v594
        %618 = vmatpush.msra.mxu0 %v590
        %619 = vmatpush.msra.mxu0 %v586
        %620 = vmatpush.msra.mxu0 %v582
        %621 = vmatpush.msra.mxu0 %v578
        %622 = vmatpush.msra.mxu0 %v574
        %623 = vmatpush.msra.mxu0 %v570
        %624 = vmatpush.msra.mxu0 %v566
        %625 = vmatpush.msra.mxu0 %v562
        %626 = vmatpush.msra.mxu0 %v558
        %627 = vmatpush.msra.mxu0 %v554
        %628 = vmatpush.msra.mxu0 %v550
        %629 = vmatpush.msra.mxu0 %v546
        %630 = vmatpush.msra.mxu0 %v542
        %631 = vmatpush.msra.mxu0 %v538
        %632 = vmatpush.msra.mxu0 %v534
        %633 = vmatmul.f32.gmra.mxu0 %v373
        %v634 = vpop.f32.mrf.mxu0
        %v635 = vadd.f32 0.0, %v634
        %636 = vdwg.mxu0
        %637 = vmatpush.msra.mxu0 %v595
        %638 = vmatpush.msra.mxu0 %v591
        %639 = vmatpush.msra.mxu0 %v587
        %640 = vmatpush.msra.mxu0 %v583
        %641 = vmatpush.msra.mxu0 %v579
        %642 = vmatpush.msra.mxu0 %v575
        %643 = vmatpush.msra.mxu0 %v571
        %644 = vmatpush.msra.mxu0 %v567
        %645 = vmatpush.msra.mxu0 %v563
        %646 = vmatpush.msra.mxu0 %v559
        %647 = vmatpush.msra.mxu0 %v555
        %648 = vmatpush.msra.mxu0 %v551
        %649 = vmatpush.msra.mxu0 %v547
        %650 = vmatpush.msra.mxu0 %v543
        %651 = vmatpush.msra.mxu0 %v539
        %652 = vmatpush.msra.mxu0 %v535
        %653 = vmatmul.f32.gmra.mxu0 %v373
        %v654 = vpop.f32.mrf.mxu0
        %v655 = vadd.f32 0.0, %v654
        %656 = vdwg.mxu0
        %657 = vmatpush.msra.mxu0 %v596
        %658 = vmatpush.msra.mxu0 %v592
        %659 = vmatpush.msra.mxu0 %v588
        %660 = vmatpush.msra.mxu0 %v584
        %661 = vmatpush.msra.mxu0 %v580
        %662 = vmatpush.msra.mxu0 %v576
        %663 = vmatpush.msra.mxu0 %v572
        %664 = vmatpush.msra.mxu0 %v568
        %665 = vmatpush.msra.mxu0 %v564
        %666 = vmatpush.msra.mxu0 %v560
        %667 = vmatpush.msra.mxu0 %v556
        %668 = vmatpush.msra.mxu0 %v552
        %669 = vmatpush.msra.mxu0 %v548
        %670 = vmatpush.msra.mxu0 %v544
        %671 = vmatpush.msra.mxu0 %v540
        %672 = vmatpush.msra.mxu0 %v536
        %673 = vmatmul.f32.gmra.mxu0 %v373
        %v674 = vpop.f32.mrf.mxu0
        %v675 = vadd.f32 0.0, %v674
        %676 = vdwg.mxu0
        %v681 = vrot.slane %v635, 4
        %v682 = vrot.slane %v675, 4
        %v683 = vsel %vm526, %v615, %v681
        %v684 = vsel %vm526, %v655, %v682
        %687 = vst [vmem:[%s318 + $0x10] sm:$0x33] %v683
        %688 = vst [vmem:[%s318 + $0x18] sm:$0x33] %v684
        %v689 = vld [vmem:[%s286] sm:$0xff]
        %v690 = vld [vmem:[%s286 + $0x8] sm:$0xff]
        %s693 = scalar_lea.vmem [#allocation1], 1
        %694 = vst [vmem:[%s693] ss:$2 sm:$0xff] %v689
        %s695 = scalar_lea.vmem [#allocation1], 17
        %696 = vst [vmem:[%s695] ss:$2 sm:$0xff] %v690
        %v697 = vld.sshfl [vmem:[#allocation1] sm:$0xff pattern:$0x75643120]
        %v698 = vld.sshfl [vmem:[#allocation1 + $0x8] sm:$0xff pattern:$0x75643120]
        %v699 = vld.sshfl [vmem:[#allocation1 + $0x10] sm:$0xff pattern:$0x75643120]
        %v700 = vld.sshfl [vmem:[#allocation1 + $0x18] sm:$0xff pattern:$0x75643120]
        %705 = vst [vmem:[%s318] sm:$0xcc] %v697
        %706 = vst [vmem:[%s318 + $0x8] sm:$0xcc] %v698
        %707 = vst [vmem:[%s318 + $0x10] sm:$0xcc] %v699
        %708 = vst [vmem:[%s318 + $0x18] sm:$0xcc] %v700
        %s709 = sand.u32 %s164, 1
        %s710 = scalar_lea.sflag [#allocation4], %s709
        %s711 = sand.u32 %s164, 1
        %s712 = smul.addr %s711, 32
        %s713 = scalar_lea.vmem [#allocation8], %s712
        // Predicated region
        $region53: #{tpu_custom_call.1} parent=39 // pred_check
          %p714 = pneg %p174
        $region54: #{tpu_custom_call.1} parent=39 // pred_check_branch
          %716 = sbr.rel (%p714) target = $region56
        $region55: #{tpu_custom_call.1} parent=39 // pred_region
          %s717 = smul.u32 8, %s28
          %719 = vsyncadd %s710, 0
          %s720 = smul.addr %s27, 8
          %s721 = sadd.s32 %s717, %s720
          %s722 = smul.addr %s721, 4
          %s723 = scalar_lea.hbm %s5, %s722
          %s725 = sshll.u32 %s713, 4
          %s726 = int_to_ptr.vmem [resolvable:$true] %s725
          %s727 = sshll.u32 %s723, 4
          %s728 = int_to_ptr.hbm [resolvable:$true] %s727
          %730 = dma.vmem_to_hbm [thread:$0]  %s726, 512, %s728, %s710
        $region56: #{tpu_custom_call.1} parent=39 // pred_fallthru
          _
      $region40: #{tpu_custom_call.1} parent=5 // pred_fallthru
        _
      %p731 = scmp.le.s32.totalorder 2, %s18
      // Predicated region
      $region57: #{tpu_custom_call.1} parent=5 // pred_check
        %p732 = pneg %p731
      $region58: #{tpu_custom_call.1} parent=5 // pred_check_branch
        %734 = sbr.rel (%p732) target = $region60
      $region59: #{tpu_custom_call.1} parent=5 // pred_region
        %s735 = ssub.s32 %s18, 2
        // Predicated region
        $region61: #{tpu_custom_call.1} parent=59 // pred_check
          %p736 = pneg %p180
        $region62: #{tpu_custom_call.1} parent=59 // pred_check_branch
          %738 = sbr.rel (%p736) target = $region64
        $region63: #{tpu_custom_call.1} parent=59 // pred_region
          %s739 = sand.u32 %s165, 1
          %s740 = scalar_lea.sflag [#allocation4], %s739
          %s741 = sand.u32 %s165, 1
          %s742 = smul.addr %s741, 32
          %s743 = scalar_lea.vmem [#allocation8], %s742
          %745 = dma.done %s740, 512
        $region64: #{tpu_custom_call.1} parent=59 // pred_fallthru
          _
      $region60: #{tpu_custom_call.1} parent=5 // pred_fallthru
        _
    $region6: #{tpu_custom_call.1} parent=1 // loop_footer
      %s22 = sadd.s32 1, %s18
    $region7: #{tpu_custom_call.1} parent=1 // loop_footer_branch
      %17 = sbr.rel target = $region3
    $region8: #{tpu_custom_call.1} parent=1 // loop_exit
      _
    %746 = vsyncpa [#allocation3], 1
    %s747 = scalar_lea.sflag [#allocation3], 1
    %748 = vsyncpa %s747, 1
    %749 = vsyncpa [#allocation6], 1
    %750 = vsyncpa [#allocation4], 1
    %s751 = scalar_lea.sflag [#allocation4], 1
    %752 = vsyncpa %s751, 1

</llo_original>
